<compile_context>
chip_gen: v7x
topology: tpu7x:2x2x1
jax: 0.10.0
libtpu: 0.0.40
codegen_flags: <defaults>
</compile_context>

<pallas_src>
import jax
import jax.numpy as jnp
from jax.experimental import pallas as pl
from jax.experimental.pallas import tpu as pltpu


def pointer_step_kernel(enc_ref, ctx_ref, cov0_ref, w1_ref, w2_ref, small_ref,
                        p_ref, cov_ref):
    t = pl.program_id(0)

    # Initialize the resident coverage accumulator from the input on the first step.
    @pl.when(t == 0)
    def _():
        cov_ref[...] = cov0_ref[...]

    enc = enc_ref[...]                      # (N, E) f32, VMEM-resident across steps
    ctx = ctx_ref[0]                        # (1, C) f32, per-step tile
    cov = cov_ref[...]                      # (N, 1) f32, running coverage

    # Packed small params, rows = [wc, fused bias (b1+b2+bc), v, bv]; one (8,128) tile.
    wc_row = small_ref[0:1, :]              # (1, H)
    b_row = small_ref[1:2, :]               # (1, H)
    v_row = small_ref[2:3, :]               # (1, H)
    bv = small_ref[3:4, 0:1]                # (1, 1)

    # MXU GEMMs, kept in (N, H) orientation (no transpose needed anywhere).
    pre = jnp.dot(enc, w1_ref[...], preferred_element_type=jnp.float32)      # (N, H)
    ctx_h = jnp.dot(ctx, w2_ref[...], preferred_element_type=jnp.float32)    # (1, H)

    # + fused bias (sublane broadcast) + wc * coverage (outer product via broadcast).
    h = jnp.tanh(pre + ctx_h + b_row + cov * wc_row)                         # (N, H)

    # v-projection as a VPU multiply + lane reduce (avoids a width-1 MXU matmul).
    u = jnp.sum(h * v_row, axis=1, keepdims=True) + bv                       # (N, 1)
    u = jnp.maximum(u, 0.0)                                                  # relu

    # softmax over sentences (sublane axis); scalar denominator -> exact divide.
    m = jnp.max(u, axis=0, keepdims=True)
    e = jnp.exp(u - m)
    s = jnp.sum(e, axis=0, keepdims=True)
    p = e / s                                                                # (N, 1)

    p_ref[0] = p                            # per-step probability tile
    cov_ref[...] = cov + p                  # coverage stays resident for step t+1


def pointer_network_decode(encoded_sentences, context_vectors, coverage_vector, params):
    """Run T pointer steps in one pallas_call.

    encoded_sentences: (N, E); context_vectors: (T, C); coverage_vector: (N, 1).
    Returns (p_all: (T, N), final coverage: (N, 1)).
    """
    n, e = encoded_sentences.shape
    t_steps, c = context_vectors.shape
    h = params["w1"].shape[1]

    ctx3 = context_vectors.reshape(t_steps, 1, c)   # leading decode axis, (1, C) tiles

    grid_spec = pltpu.PrefetchScalarGridSpec(
        num_scalar_prefetch=0,
        grid=(t_steps,),
        in_specs=[
            pl.BlockSpec((n, e), lambda t: (0, 0)),         # enc: resident
            pl.BlockSpec((1, 1, c), lambda t: (t, 0, 0)),   # context: per-step tile
            pl.BlockSpec((n, 1), lambda t: (0, 0)),         # initial coverage: resident
            pl.BlockSpec((e, h), lambda t: (0, 0)),         # w1: resident
            pl.BlockSpec((c, h), lambda t: (0, 0)),         # w2: resident
            pl.BlockSpec((4, h), lambda t: (0, 0)),         # small slab: resident
        ],
        out_specs=[
            pl.BlockSpec((1, n, 1), lambda t: (t, 0, 0)),   # p_t per step
            pl.BlockSpec((n, 1), lambda t: (0, 0)),         # coverage accumulator
        ],
    )

    p_all, cov_out = pl.pallas_call(
        pointer_step_kernel,
        out_shape=(
            jax.ShapeDtypeStruct((t_steps, n, 1), jnp.float32),
            jax.ShapeDtypeStruct((n, 1), jnp.float32),
        ),
        grid_spec=grid_spec,
        # coverage (input 2) is updated in place into output 1
        input_output_aliases={2: 1},
        # decode axis is a recurrence (coverage carry) -> sequential.  A document
        # batch axis, if added, would go first and be "parallel" (v7x: 2 TCs).
        compiler_params=pltpu.CompilerParams(dimension_semantics=("arbitrary",)),
    )(encoded_sentences, ctx3, coverage_vector,
      params["w1"], params["w2"], params["small"])

    return p_all[:, :, 0], cov_out


def pointer_network(encoded_sentences, context_vector, coverage_vector, params):
    """Single pointer step == the PyTorch module's forward.

    encoded_sentences: (N, E); context_vector: (1, C); coverage_vector: (N, 1).
    Returns (conditional_p: (N,), updated coverage: (N, 1)).
    """
    p_all, cov_out = pointer_network_decode(
        encoded_sentences, context_vector.reshape(1, -1), coverage_vector, params)
    return p_all[0], cov_out


def init_params(key, encoder_dim, context_size, hidden_size):
    ks = jax.random.split(key, 8)

    def lin(kw, kb, fan_in, fan_out):
        # mimic nn.Linear default init (uniform +-1/sqrt(fan_in)); stored as (in, out)
        bound = 1.0 / (fan_in ** 0.5)
        w = jax.random.uniform(kw, (fan_in, fan_out), jnp.float32, -bound, bound)
        b = jax.random.uniform(kb, (1, fan_out), jnp.float32, -bound, bound)
        return w, b

    w1, b1 = lin(ks[0], ks[1], encoder_dim, hidden_size)      # (E, H), (1, H)
    w2, b2 = lin(ks[2], ks[3], context_size, hidden_size)     # (C, H), (1, H)
    wc, bc = lin(ks[4], ks[5], 1, hidden_size)                # (1, H), (1, H)
    v, bv = lin(ks[6], ks[7], hidden_size, 1)                 # (H, 1), (1, 1)

    # Fuse the three biases added inside tanh; pack small per-feature vectors into a
    # single lane-contiguous (4, H) slab: rows = [wc, b_fused, v, bv].
    b_fused = b1 + b2 + bc                                    # (1, H)
    small = jnp.concatenate(
        [wc, b_fused, v.T, jnp.full((1, hidden_size), bv[0, 0], jnp.float32)],
        axis=0)                                               # (4, H)

    return {"w1": w1, "w2": w2, "small": small,
            # raw pieces kept only for the pure-JAX reference check
            "b1": b1, "b2": b2, "wc": wc, "bc": bc, "v": v, "bv": bv}


if __name__ == "__main__":
    # small shapes consistent with the module's forward
    document_size = 8
    encoder_dim = 32
    context_size = 16
    hidden_size = 32
    decode_steps = 4

    key = jax.random.PRNGKey(0)
    k_enc, k_ctx, k_par = jax.random.split(key, 3)

    encoded_sentences = jax.random.normal(k_enc, (document_size, encoder_dim), jnp.float32)
    context_vector = jax.random.normal(k_ctx, (1, context_size), jnp.float32)
    coverage_vector = jnp.zeros((document_size, 1), jnp.float32)
    params = init_params(k_par, encoder_dim, context_size, hidden_size)

    # pure-JAX reference of one module forward (unfused weights)
    def ref_step(enc, ctx, cov, prm):
        hh = jnp.tanh(enc @ prm["w1"] + prm["b1"]
                      + (ctx @ prm["w2"] + prm["b2"])
                      + (cov * prm["wc"] + prm["bc"]))
        u = jnp.maximum(hh @ prm["v"] + prm["bv"], 0.0)
        pr = jax.nn.softmax(u, axis=0)
        return pr.squeeze(-1), cov + pr

    # --- single-step forward: exactly the PyTorch module's forward -----------------
    fwd = jax.jit(pointer_network)
    p, cov_out = fwd(encoded_sentences, context_vector, coverage_vector, params)
    jax.block_until_ready((p, cov_out))

    p_ref, cov_ref = ref_step(encoded_sentences, context_vector, coverage_vector, params)
    assert p.shape == (document_size,) and cov_out.shape == (document_size, 1)
    assert jnp.allclose(p, p_ref, atol=1e-5), "probability mismatch"
    assert jnp.allclose(cov_out, cov_ref, atol=1e-5), "coverage mismatch"

    # --- multi-step decode: loop folded into the pallas grid (weights stay resident) -
    context_vectors = jax.random.normal(k_ctx, (decode_steps, context_size), jnp.float32)
    dec = jax.jit(pointer_network_decode)
    p_all, cov_final = dec(encoded_sentences, context_vectors, coverage_vector, params)
    jax.block_until_ready((p_all, cov_final))

    cov_r = coverage_vector
    ps = []
    for t in range(decode_steps):
        p_t, cov_r = ref_step(encoded_sentences, context_vectors[t:t + 1], cov_r, params)
        ps.append(p_t)
    p_all_ref = jnp.stack(ps, axis=0)
    assert p_all.shape == (decode_steps, document_size)
    assert jnp.allclose(p_all, p_all_ref, atol=1e-5), "decode probability mismatch"
    assert jnp.allclose(cov_final, cov_r, atol=1e-5), "decode coverage mismatch"

    print("KERNEL_OK")
</pallas_src>

<mosaic_0001>
module attributes {stable_mosaic.version = 11 : i64} {
  func.func @pointer_step_kernel(%arg0: i32, %arg1: memref<8x32xf32, #tpu.memory_space<vmem>>, %arg2: memref<1x1x16xf32, #tpu.memory_space<vmem>>, %arg3: memref<8x1xf32, #tpu.memory_space<vmem>>, %arg4: memref<32x32xf32, #tpu.memory_space<vmem>>, %arg5: memref<16x32xf32, #tpu.memory_space<vmem>>, %arg6: memref<4x32xf32, #tpu.memory_space<vmem>>, %arg7: memref<1x8x1xf32, #tpu.memory_space<vmem>>, %arg8: memref<8x1xf32, #tpu.memory_space<vmem>>) attributes {dimension_semantics = [#tpu.dimension_semantics<arbitrary>], iteration_bounds = array<i64: 1>, scalar_prefetch = 0 : i64, scratch_operands = 0 : i64, tpu.core_type = #tpu.core_type<tc>, window_params = [{pipeline_mode = #tpu.pipeline_mode<synchronous>, transform_indices = @transform_0, window_bounds = array<i64: 8, 32>}, {transform_indices = @transform_1, window_bounds = array<i64: 1, 1, 16>}, {pipeline_mode = #tpu.pipeline_mode<synchronous>, transform_indices = @transform_2, window_bounds = array<i64: 8, 1>}, {pipeline_mode = #tpu.pipeline_mode<synchronous>, transform_indices = @transform_3, window_bounds = array<i64: 32, 32>}, {pipeline_mode = #tpu.pipeline_mode<synchronous>, transform_indices = @transform_4, window_bounds = array<i64: 16, 32>}, {pipeline_mode = #tpu.pipeline_mode<synchronous>, transform_indices = @transform_5, window_bounds = array<i64: 4, 32>}, {transform_indices = @transform_6, window_bounds = array<i64: 1, 8, 1>}, {pipeline_mode = #tpu.pipeline_mode<synchronous>, transform_indices = @transform_7, window_bounds = array<i64: 8, 1>}]} {
    %c0_i32 = arith.constant 0 : i32
    %0 = arith.cmpi eq, %arg0, %c0_i32 : i32
    %1 = arith.extui %0 : i1 to i32
    %c0_i32_0 = arith.constant 0 : i32
    %2 = arith.cmpi ne, %1, %c0_i32_0 : i32
    scf.if %2 {
      %c0_26 = arith.constant 0 : index
      %c0_27 = arith.constant 0 : index
      %46 = vector.load %arg3[%c0_26, %c0_27] : memref<8x1xf32, #tpu.memory_space<vmem>>, vector<8x1xf32>
      %c0_28 = arith.constant 0 : index
      %c0_29 = arith.constant 0 : index
      %47 = vector.load %arg8[%c0_28, %c0_29] : memref<8x1xf32, #tpu.memory_space<vmem>>, vector<8x1xf32>
      tpu.vector_store %arg8[%c0_28, %c0_29], %46 {strides = array<i32>} : memref<8x1xf32, #tpu.memory_space<vmem>>, vector<8x1xf32>,
    } else {
    }
    %c0 = arith.constant 0 : index
    %c0_1 = arith.constant 0 : index
    %3 = vector.load %arg1[%c0, %c0_1] : memref<8x32xf32, #tpu.memory_space<vmem>>, vector<8x32xf32>
    %c0_2 = arith.constant 0 : index
    %c0_3 = arith.constant 0 : index
    %c0_4 = arith.constant 0 : index
    %4 = vector.load %arg2[%c0_2, %c0_3, %c0_4] : memref<1x1x16xf32, #tpu.memory_space<vmem>>, vector<1x1x16xf32>
    %5 = vector.shape_cast %4 : vector<1x1x16xf32> to vector<1x16xf32>
    %c0_5 = arith.constant 0 : index
    %c0_6 = arith.constant 0 : index
    %6 = vector.load %arg8[%c0_5, %c0_6] : memref<8x1xf32, #tpu.memory_space<vmem>>, vector<8x1xf32>
    %c0_7 = arith.constant 0 : index
    %c0_8 = arith.constant 0 : index
    %7 = vector.load %arg6[%c0_7, %c0_8] : memref<4x32xf32, #tpu.memory_space<vmem>>, vector<1x32xf32>
    %c1 = arith.constant 1 : index
    %c0_9 = arith.constant 0 : index
    %8 = vector.load %arg6[%c1, %c0_9] : memref<4x32xf32, #tpu.memory_space<vmem>>, vector<1x32xf32>
    %c2 = arith.constant 2 : index
    %c0_10 = arith.constant 0 : index
    %9 = vector.load %arg6[%c2, %c0_10] : memref<4x32xf32, #tpu.memory_space<vmem>>, vector<1x32xf32>
    %c3 = arith.constant 3 : index
    %c0_11 = arith.constant 0 : index
    %10 = vector.load %arg6[%c3, %c0_11] : memref<4x32xf32, #tpu.memory_space<vmem>>, vector<1x1xf32>
    %c0_12 = arith.constant 0 : index
    %c0_13 = arith.constant 0 : index
    %11 = vector.load %arg4[%c0_12, %c0_13] : memref<32x32xf32, #tpu.memory_space<vmem>>, vector<32x32xf32>
    %cst = arith.constant dense<0.000000e+00> : vector<8x32xf32>
    %12 = tpu.matmul %3, %11, %cst {dimension_numbers = #tpu.dot_dimension_numbers<[1], [0], [0], [1], [0, 0, 1, 1], [], []>} : vector<8x32xf32>, vector<32x32xf32>, vector<8x32xf32> -> vector<8x32xf32>
    %c0_14 = arith.constant 0 : index
    %c0_15 = arith.constant 0 : index
    %13 = vector.load %arg5[%c0_14, %c0_15] : memref<16x32xf32, #tpu.memory_space<vmem>>, vector<16x32xf32>
    %cst_16 = arith.constant dense<0.000000e+00> : vector<1x32xf32>
    %14 = tpu.matmul %5, %13, %cst_16 {dimension_numbers = #tpu.dot_dimension_numbers<[1], [0], [0], [1], [0, 0, 1, 1], [], []>} : vector<1x16xf32>, vector<16x32xf32>, vector<1x32xf32> -> vector<1x32xf32>
    %15 = vector.broadcast %14 : vector<1x32xf32> to vector<8x32xf32>
    %16 = arith.addf %12, %15 : vector<8x32xf32>
    %17 = vector.broadcast %8 : vector<1x32xf32> to vector<8x32xf32>
    %18 = arith.addf %16, %17 : vector<8x32xf32>
    %19 = vector.broadcast %6 : vector<8x1xf32> to vector<8x32xf32>
    %20 = vector.broadcast %7 : vector<1x32xf32> to vector<8x32xf32>
    %21 = arith.mulf %19, %20 : vector<8x32xf32>
    %22 = arith.addf %18, %21 : vector<8x32xf32>
    %23 = math.tanh %22 : vector<8x32xf32>
    %24 = vector.broadcast %9 : vector<1x32xf32> to vector<8x32xf32>
    %25 = arith.mulf %23, %24 : vector<8x32xf32>
    %cst_17 = arith.constant dense<0.000000e+00> : vector<8xf32>
    %26 = vector.multi_reduction <add>, %25, %cst_17 [1] : vector<8x32xf32> to vector<8xf32>
    %27 = vector.shape_cast %26 : vector<8xf32> to vector<8x1xf32>
    %28 = vector.broadcast %10 : vector<1x1xf32> to vector<8x1xf32>
    %29 = arith.addf %27, %28 : vector<8x1xf32>
    %cst_18 = arith.constant 0.000000e+00 : f32
    %30 = vector.broadcast %cst_18 : f32 to vector<8x1xf32>
    %31 = arith.maximumf %29, %30 : vector<8x1xf32>
    %cst_19 = arith.constant dense<0xFF800000> : vector<1xf32>
    %32 = vector.multi_reduction <maximumf>, %31, %cst_19 [0] : vector<8x1xf32> to vector<1xf32>
    %33 = vector.shape_cast %32 : vector<1xf32> to vector<1x1xf32>
    %34 = vector.broadcast %33 : vector<1x1xf32> to vector<8x1xf32>
    %35 = arith.subf %31, %34 : vector<8x1xf32>
    %36 = math.exp %35 : vector<8x1xf32>
    %cst_20 = arith.constant dense<0.000000e+00> : vector<1xf32>
    %37 = vector.multi_reduction <add>, %36, %cst_20 [0] : vector<8x1xf32> to vector<1xf32>
    %38 = vector.shape_cast %37 : vector<1xf32> to vector<1x1xf32>
    %39 = vector.broadcast %38 : vector<1x1xf32> to vector<8x1xf32>
    %40 = arith.divf %36, %39 : vector<8x1xf32>
    %c0_21 = arith.constant 0 : index
    %c0_22 = arith.constant 0 : index
    %c0_23 = arith.constant 0 : index
    %41 = vector.load %arg7[%c0_21, %c0_22, %c0_23] : memref<1x8x1xf32, #tpu.memory_space<vmem>>, vector<1x8x1xf32>
    %42 = vector.shape_cast %41 : vector<1x8x1xf32> to vector<8x1xf32>
    %43 = vector.shape_cast %40 : vector<8x1xf32> to vector<1x8x1xf32>
    tpu.vector_store %arg7[%c0_21, %c0_22, %c0_23], %43 {strides = array<i32>} : memref<1x8x1xf32, #tpu.memory_space<vmem>>, vector<1x8x1xf32>,
    %44 = arith.addf %6, %40 : vector<8x1xf32>
    %c0_24 = arith.constant 0 : index
    %c0_25 = arith.constant 0 : index
    %45 = vector.load %arg8[%c0_24, %c0_25] : memref<8x1xf32, #tpu.memory_space<vmem>>, vector<8x1xf32>
    tpu.vector_store %arg8[%c0_24, %c0_25], %44 {strides = array<i32>} : memref<8x1xf32, #tpu.memory_space<vmem>>, vector<8x1xf32>,
    return
  }
  func.func @transform_0(%arg0: i32) -> (i32, i32) {
    %c0_i32 = arith.constant 0 : i32
    %c0_i32_0 = arith.constant 0 : i32
    %c0_i32_1 = arith.constant 0 : i32
    return %c0_i32, %c0_i32_0 : i32, i32
  }
  func.func @transform_1(%arg0: i32) -> (i32, i32, i32) {
    %c0_i32 = arith.constant 0 : i32
    %c0_i32_0 = arith.constant 0 : i32
    %c0_i32_1 = arith.constant 0 : i32
    return %arg0, %c0_i32, %c0_i32_0 : i32, i32, i32
  }
  func.func @transform_2(%arg0: i32) -> (i32, i32) {
    %c0_i32 = arith.constant 0 : i32
    %c0_i32_0 = arith.constant 0 : i32
    %c0_i32_1 = arith.constant 0 : i32
    return %c0_i32, %c0_i32_0 : i32, i32
  }
  func.func @transform_3(%arg0: i32) -> (i32, i32) {
    %c0_i32 = arith.constant 0 : i32
    %c0_i32_0 = arith.constant 0 : i32
    %c0_i32_1 = arith.constant 0 : i32
    return %c0_i32, %c0_i32_0 : i32, i32
  }
  func.func @transform_4(%arg0: i32) -> (i32, i32) {
    %c0_i32 = arith.constant 0 : i32
    %c0_i32_0 = arith.constant 0 : i32
    %c0_i32_1 = arith.constant 0 : i32
    return %c0_i32, %c0_i32_0 : i32, i32
  }
  func.func @transform_5(%arg0: i32) -> (i32, i32) {
    %c0_i32 = arith.constant 0 : i32
    %c0_i32_0 = arith.constant 0 : i32
    %c0_i32_1 = arith.constant 0 : i32
    return %c0_i32, %c0_i32_0 : i32, i32
  }
  func.func @transform_6(%arg0: i32) -> (i32, i32, i32) {
    %c0_i32 = arith.constant 0 : i32
    %c0_i32_0 = arith.constant 0 : i32
    %c0_i32_1 = arith.constant 0 : i32
    return %arg0, %c0_i32, %c0_i32_0 : i32, i32, i32
  }
  func.func @transform_7(%arg0: i32) -> (i32, i32) {
    %c0_i32 = arith.constant 0 : i32
    %c0_i32_0 = arith.constant 0 : i32
    %c0_i32_1 = arith.constant 0 : i32
    return %c0_i32, %c0_i32_0 : i32, i32
  }
}

</mosaic_0001>

<llo_original>
// kernel: pointer_network.1
$region0: #{pointer_network.1}
  #allocation0 [shape = 'u32[]', space=smem, size = 0x4, offset = 0x4, fixed_abs, tag = 'smem constant byte address 0x4 - core index']
  #allocation1 [shape = 'u32[144,128]{1,0:T(1,128)}', space=vmem, size = 0x12000, scoped, tag = 'internal scratch']
  %s0 = inlined_call_operand.vmem [shape: f32[8,32], index: 0, kind: input, shape index: {}]
  %s1 = inlined_call_operand.vmem [shape: f32[1,1,16], index: 1, kind: input, shape index: {}]
  %s2 = inlined_call_operand.vmem [shape: f32[8,1], index: 2, kind: input, shape index: {}, may-alias: {2,7}]
  %s3 = inlined_call_operand.hbm [shape: f32[32,32], index: 3, kind: input, shape index: {}]
  %s4 = inlined_call_operand.vmem [shape: f32[16,32], index: 4, kind: input, shape index: {}]
  %s5 = inlined_call_operand.vmem [shape: f32[4,32], index: 5, kind: input, shape index: {}]
  %s6 = inlined_call_operand.vmem [shape: f32[1,8,1], index: 6, kind: output, shape index: {0}]
  %s7 = inlined_call_operand.vmem [shape: f32[8,1], index: 7, kind: output, shape index: {1}, may-alias: {2,7}]
  %8 = xla_tuple %s6, %s7
  %s9 = sld [smem:[#allocation0]]
  $region50: #{pointer_network.1} parent=0
    _
  %s11 = ssub.s32 1, %s9
  %s12 = scalar_select 0, %s11, %s9
  $region1: #{pointer_network.1} parent=0
    #allocation2 [shape = 'u8[16384]{0}', space=vmem, size = 0x4000, scoped, tag = 'input window, operand 3, single buffered']
    #allocation3 [shape = 's32[1]{0}', space=sflag, size = 0x4, scoped, tag = 'scoped memory for pointer_network.1']
    %13 = vsyncpa [#allocation3], 0
    // Predicated region
    $region2: #{pointer_network.1} parent=1 // pred_check
      _
    $region3: #{pointer_network.1} parent=1 // pred_check_branch
      %15 = sbr.rel (0) target = $region5
    $region4: #{pointer_network.1} parent=1 // pred_region
      _
    $region5: #{pointer_network.1} parent=1 // pred_fallthru
      _
    // Predicated region
    $region6: #{pointer_network.1} parent=1 // pred_check
      _
    $region7: #{pointer_network.1} parent=1 // pred_check_branch
      %17 = sbr.rel (0) target = $region9
    $region8: #{pointer_network.1} parent=1 // pred_region
      _
    $region9: #{pointer_network.1} parent=1 // pred_fallthru
      _
    // Predicated region
    $region10: #{pointer_network.1} parent=1 // pred_check
      _
    $region11: #{pointer_network.1} parent=1 // pred_check_branch
      %19 = sbr.rel (0) target = $region13
    $region12: #{pointer_network.1} parent=1 // pred_region
      _
    $region13: #{pointer_network.1} parent=1 // pred_fallthru
      _
    // Predicated region
    $region14: #{pointer_network.1} parent=1 // pred_check
      _
    $region15: #{pointer_network.1} parent=1 // pred_check_branch
      %21 = sbr.rel (0) target = $region17
    $region16: #{pointer_network.1} parent=1 // pred_region
      %s23 = ssub.s32 512, 512
      %24 = vsyncadd [#allocation3], %s23
      %s25 = sshll.u32 [#allocation2], 4
      %s26 = int_to_ptr.vmem [resolvable:$true] %s25
      %31 = dma.hbm_to_vmem [thread:$0]  %s3, 512, %s26, [#allocation3], 128, 128, 8
    $region17: #{pointer_network.1} parent=1 // pred_fallthru
      _
    // Predicated region
    $region18: #{pointer_network.1} parent=1 // pred_check
      _
    $region19: #{pointer_network.1} parent=1 // pred_check_branch
      %33 = sbr.rel (0) target = $region21
    $region20: #{pointer_network.1} parent=1 // pred_region
      _
    $region21: #{pointer_network.1} parent=1 // pred_fallthru
      _
    // Predicated region
    $region22: #{pointer_network.1} parent=1 // pred_check
      _
    $region23: #{pointer_network.1} parent=1 // pred_check_branch
      %35 = sbr.rel (0) target = $region25
    $region24: #{pointer_network.1} parent=1 // pred_region
      _
    $region25: #{pointer_network.1} parent=1 // pred_fallthru
      _
    // Predicated region
    $region26: #{pointer_network.1} parent=1 // pred_check
      _
    $region27: #{pointer_network.1} parent=1 // pred_check_branch
      %37 = sbr.rel (0) target = $region29
    $region28: #{pointer_network.1} parent=1 // pred_region
      %38 = dma.done [#allocation3], 512
    $region29: #{pointer_network.1} parent=1 // pred_fallthru
      _
    %p39 = scmp.eq.s32.totalorder 0, 0
    // Predicated region
    $region30: #{pointer_network.1} parent=1 // pred_check
      %p40 = pneg %p39
    $region31: #{pointer_network.1} parent=1 // pred_check_branch
      %42 = sbr.rel (%p40) target = $region33
    $region32: #{pointer_network.1} parent=1 // pred_region
      %v43 = vld [vmem:[%s2] sm:$0xff]
      %vm44 = vcmask 7168
      %45 = vst.msk [vmem:[%s7] sm:$0xff] %vm44, %v43
    $region33: #{pointer_network.1} parent=1 // pred_fallthru
      _
    %v46 = vld [vmem:[%s0] sm:$0xff]
    %v47 = vld [vmem:[%s1] sm:$0x1]
    %v48 = vld [vmem:[%s7] sm:$0xff]
    %v49 = vld [vmem:[%s5] sm:$0x1]
    %v50 = vld [vmem:[%s5 + $0x1] sm:$0x1]
    %v51 = vld [vmem:[%s5 + $0x2] sm:$0x1]
    %v52 = vld [vmem:[%s5 + $0x3] sm:$0x1]
    %v53 = vld [vmem:[#allocation2] sm:$0xff]
    %v54 = vld [vmem:[#allocation2 + $0x8] sm:$0xff]
    %v55 = vld [vmem:[#allocation2 + $0x10] sm:$0xff]
    %v56 = vld [vmem:[#allocation2 + $0x18] sm:$0xff]
    %v57 = vld [vmem:[%s4] sm:$0xff]
    %v58 = vld [vmem:[%s4 + $0x8] sm:$0xff]
    %vm59 = vcmask 130048
    %v61 = vsel %vm59, %v47, 0
    %63 = vmatprep.subr.mxu0 0.0
    %64 = vmatpush1.msra.mxu0 %v57
    %65 = vmatprep.subr.mxu0 0.0
    %66 = vmatpush1.msra.mxu0 %v58
    %67 = vmatprep.subr.mxu0 0.0
    %68 = vmatpush1.msra.mxu0 0.0
    %69 = vmatprep.subr.mxu0 0.0
    %70 = vmatpush1.msra.mxu0 0.0
    %71 = vmatprep.subr.mxu0 0.0
    %72 = vmatpush1.msra.mxu0 0.0
    %73 = vmatprep.subr.mxu0 0.0
    %74 = vmatpush1.msra.mxu0 0.0
    %75 = vmatprep.subr.mxu0 0.0
    %76 = vmatpush1.msra.mxu0 0.0
    %77 = vmatprep.subr.mxu0 0.0
    %78 = vmatpush1.msra.mxu0 0.0
    %79 = vmatprep.subr.mxu0 0.0
    %80 = vmatpush1.msra.mxu0 0.0
    %81 = vmatprep.subr.mxu0 0.0
    %82 = vmatpush1.msra.mxu0 0.0
    %83 = vmatprep.subr.mxu0 0.0
    %84 = vmatpush1.msra.mxu0 0.0
    %85 = vmatprep.subr.mxu0 0.0
    %86 = vmatpush1.msra.mxu0 0.0
    %87 = vmatprep.subr.mxu0 0.0
    %88 = vmatpush1.msra.mxu0 0.0
    %89 = vmatprep.subr.mxu0 0.0
    %90 = vmatpush1.msra.mxu0 0.0
    %91 = vmatprep.subr.mxu0 0.0
    %92 = vmatpush1.msra.mxu0 0.0
    %93 = vmatprep.subr.mxu0 0.0
    %94 = vmatpush1.msra.mxu0 0.0
    %95 = vmatprep.subr.mxu0 0.0
    %96 = vmatpush1.msra.mxu0 0.0
    %97 = vmatprep.subr.mxu0 0.0
    %98 = vmatpush1.msra.mxu0 0.0
    %99 = vmatprep.subr.mxu0 0.0
    %100 = vmatpush1.msra.mxu0 0.0
    %101 = vmatprep.subr.mxu0 0.0
    %102 = vmatpush1.msra.mxu0 0.0
    %103 = vmatprep.subr.mxu0 0.0
    %104 = vmatpush1.msra.mxu0 0.0
    %105 = vmatprep.subr.mxu0 0.0
    %106 = vmatpush1.msra.mxu0 0.0
    %107 = vmatprep.subr.mxu0 0.0
    %108 = vmatpush1.msra.mxu0 0.0
    %109 = vmatprep.subr.mxu0 0.0
    %110 = vmatpush1.msra.mxu0 0.0
    %111 = vmatprep.subr.mxu0 0.0
    %112 = vmatpush1.msra.mxu0 0.0
    %113 = vmatprep.subr.mxu0 0.0
    %114 = vmatpush1.msra.mxu0 0.0
    %115 = vmatprep.subr.mxu0 0.0
    %116 = vmatpush1.msra.mxu0 0.0
    %117 = vmatprep.subr.mxu0 0.0
    %118 = vmatpush1.msra.mxu0 0.0
    %119 = vmatprep.subr.mxu0 0.0
    %120 = vmatpush1.msra.mxu0 0.0
    %121 = vmatprep.subr.mxu0 0.0
    %122 = vmatpush1.msra.mxu0 0.0
    %123 = vmatprep.subr.mxu0 0.0
    %124 = vmatpush1.msra.mxu0 0.0
    %125 = vmatprep.subr.mxu0 0.0
    %126 = vmatpush1.msra.mxu0 0.0
    %127 = vmatprep.mubr.f32.mxu0 0.0
    %128 = vmatmul.mubr.f32.gmra.mrb[0].mxu0 %v61
    %v129 = vpop.f32.mrb[0].mxu0
    %v130 = vadd.f32 0.0, %v129
    %v131 = vpop.f32.mrb[0].mxu0
    %132 = vdwg.mxu0
    %v133 = vlaneseq
    %v134 = vshrl.u32 %v133, 7
    %v135 = vsub.s32 0, %v134
    %v136 = vrot.slane %v130, %v135
    %vm137 = vcmask 261120
    %v139 = vsel %vm137, %v46, 0
    %141 = vmatprep.subr.mxu0 0.0
    %142 = vmatpush1.msra.mxu0 %v53
    %143 = vmatprep.subr.mxu0 0.0
    %144 = vmatpush1.msra.mxu0 %v54
    %145 = vmatprep.subr.mxu0 0.0
    %146 = vmatpush1.msra.mxu0 %v55
    %147 = vmatprep.subr.mxu0 0.0
    %148 = vmatpush1.msra.mxu0 %v56
    %149 = vmatprep.subr.mxu0 0.0
    %150 = vmatpush1.msra.mxu0 0.0
    %151 = vmatprep.subr.mxu0 0.0
    %152 = vmatpush1.msra.mxu0 0.0
    %153 = vmatprep.subr.mxu0 0.0
    %154 = vmatpush1.msra.mxu0 0.0
    %155 = vmatprep.subr.mxu0 0.0
    %156 = vmatpush1.msra.mxu0 0.0
    %157 = vmatprep.subr.mxu0 0.0
    %158 = vmatpush1.msra.mxu0 0.0
    %159 = vmatprep.subr.mxu0 0.0
    %160 = vmatpush1.msra.mxu0 0.0
    %161 = vmatprep.subr.mxu0 0.0
    %162 = vmatpush1.msra.mxu0 0.0
    %163 = vmatprep.subr.mxu0 0.0
    %164 = vmatpush1.msra.mxu0 0.0
    %165 = vmatprep.subr.mxu0 0.0
    %166 = vmatpush1.msra.mxu0 0.0
    %167 = vmatprep.subr.mxu0 0.0
    %168 = vmatpush1.msra.mxu0 0.0
    %169 = vmatprep.subr.mxu0 0.0
    %170 = vmatpush1.msra.mxu0 0.0
    %171 = vmatprep.subr.mxu0 0.0
    %172 = vmatpush1.msra.mxu0 0.0
    %173 = vmatprep.subr.mxu0 0.0
    %174 = vmatpush1.msra.mxu0 0.0
    %175 = vmatprep.subr.mxu0 0.0
    %176 = vmatpush1.msra.mxu0 0.0
    %177 = vmatprep.subr.mxu0 0.0
    %178 = vmatpush1.msra.mxu0 0.0
    %179 = vmatprep.subr.mxu0 0.0
    %180 = vmatpush1.msra.mxu0 0.0
    %181 = vmatprep.subr.mxu0 0.0
    %182 = vmatpush1.msra.mxu0 0.0
    %183 = vmatprep.subr.mxu0 0.0
    %184 = vmatpush1.msra.mxu0 0.0
    %185 = vmatprep.subr.mxu0 0.0
    %186 = vmatpush1.msra.mxu0 0.0
    %187 = vmatprep.subr.mxu0 0.0
    %188 = vmatpush1.msra.mxu0 0.0
    %189 = vmatprep.subr.mxu0 0.0
    %190 = vmatpush1.msra.mxu0 0.0
    %191 = vmatprep.subr.mxu0 0.0
    %192 = vmatpush1.msra.mxu0 0.0
    %193 = vmatprep.subr.mxu0 0.0
    %194 = vmatpush1.msra.mxu0 0.0
    %195 = vmatprep.subr.mxu0 0.0
    %196 = vmatpush1.msra.mxu0 0.0
    %197 = vmatprep.subr.mxu0 0.0
    %198 = vmatpush1.msra.mxu0 0.0
    %199 = vmatprep.subr.mxu0 0.0
    %200 = vmatpush1.msra.mxu0 0.0
    %201 = vmatprep.subr.mxu0 0.0
    %202 = vmatpush1.msra.mxu0 0.0
    %203 = vmatprep.subr.mxu0 0.0
    %204 = vmatpush1.msra.mxu0 0.0
    %205 = vmatprep.mubr.f32.mxu0 0.0
    %206 = vmatmul.mubr.f32.gmra.mrb[0].mxu0 %v139
    %v207 = vpop.f32.mrb[0].mxu0
    %v208 = vadd.f32 %v136, %v207
    %v209 = vpop.f32.mrb[0].mxu0
    %210 = vdwg.mxu0
    %v211 = vlaneseq
    %v212 = vshrl.u32 %v211, 7
    %v213 = vsub.s32 0, %v212
    %v214 = vrot.slane %v50, %v213
    %v215 = vadd.f32 %v208, %v214
    %217 = vset.pattern.permute.xlu0 0
    %218 = vperm.xlu0 %217, %v48
    %v219 = vpop.permute.xlu0 %218
    %v221 = vlaneseq
    %v222 = vshrl.u32 %v221, 7
    %v223 = vsub.s32 0, %v222
    %v224 = vrot.slane %v49, %v223
    %v225 = vmul.f32 %v219, %v224
    %v226 = vadd.f32 %v215, %v225
    %v227 = vtanh.pop %v226
    %v228 = vlaneseq
    %v229 = vshrl.u32 %v228, 7
    %v230 = vsub.s32 0, %v229
    %v231 = vrot.slane %v51, %v230
    %v232 = vmul.f32 %v227, %v231
    %v233 = vsel %vm137, %v232, 0.0
    %234 = vadd.xlane.f32.xlu0 %v233
    %v235 = vpop.xlane.xlu0 %234
    %v236 = vlaneseq
    %v237 = vshrl.u32 %v236, 7
    %v238 = vsub.s32 0, %v237
    %v239 = vrot.slane %v52, %v238
    %v240 = vadd.f32 %v235, %v239
    %v241 = vmax.f32 %v240, 0.0
    %vm242 = vcmask 7168
    %v243 = vsel %vm242, %v241, -inf
    %v244 = vrot.slane %v243, 4
    %v245 = vmax.f32 %v243, %v244
    %v246 = vrot.slane %v245, 2
    %v247 = vmax.f32 %v245, %v246
    %v248 = vrot.slane %v247, 1
    %v249 = vmax.f32 %v247, %v248
    %v250 = vsub.f32 %v241, %v249
    %v251 = vmul.f32 %v250, 1.442695
    %v252 = vpow.pop %v251
    %v253 = vsel %vm242, %v252, 0.0
    %v254 = vrot.slane %v253, 4
    %v255 = vadd.f32 %v253, %v254
    %v256 = vrot.slane %v255, 2
    %v257 = vadd.f32 %v255, %v256
    %v258 = vrot.slane %v257, 1
    %v259 = vadd.f32 %v257, %v258
    %v260 = vrcp.pop %v259
    %v261 = vmul.f32 %v252, %v260
    %262 = vst.msk [vmem:[%s6] sm:$0xff] %vm242, %v261
    %v263 = vadd.f32 %v48, %v261
    %264 = vst.msk [vmem:[%s7] sm:$0xff] %vm242, %v263
    // Predicated region
    $region34: #{pointer_network.1} parent=1 // pred_check
      _
    $region35: #{pointer_network.1} parent=1 // pred_check_branch
      %266 = sbr.rel (0) target = $region37
    $region36: #{pointer_network.1} parent=1 // pred_region
      _
    $region37: #{pointer_network.1} parent=1 // pred_fallthru
      _
    // Predicated region
    $region38: #{pointer_network.1} parent=1 // pred_check
      _
    $region39: #{pointer_network.1} parent=1 // pred_check_branch
      %268 = sbr.rel (0) target = $region41
    $region40: #{pointer_network.1} parent=1 // pred_region
      _
    $region41: #{pointer_network.1} parent=1 // pred_fallthru
      _
    // Predicated region
    $region42: #{pointer_network.1} parent=1 // pred_check
      _
    $region43: #{pointer_network.1} parent=1 // pred_check_branch
      %270 = sbr.rel (0) target = $region45
    $region44: #{pointer_network.1} parent=1 // pred_region
      _
    $region45: #{pointer_network.1} parent=1 // pred_fallthru
      _
    // Predicated region
    $region46: #{pointer_network.1} parent=1 // pred_check
      _
    $region47: #{pointer_network.1} parent=1 // pred_check_branch
      %272 = sbr.rel (0) target = $region49
    $region48: #{pointer_network.1} parent=1 // pred_region
      _
    $region49: #{pointer_network.1} parent=1 // pred_fallthru
      _
    %273 = vsyncpa [#allocation3], 1

</llo_original>
